<compile_context>
chip_gen: v7x
topology: tpu7x:2x2x1
jax: 0.10.0
libtpu: 0.0.40
codegen_flags: <defaults>
</compile_context>

<pallas_src>
import functools

import jax
import jax.numpy as jnp
from jax.experimental import pallas as pl
from jax.experimental.pallas import tpu as pltpu


def _round_up(x, m):
    return (x + m - 1) // m * m


def _default_fold_batch():
    """Fold batch into lanes on single-TensorCore chips (v5e/v6e); keep the
    batch on a 'parallel' grid axis on multi-core chips (v7x, v4/v5p)."""
    try:
        kind = jax.devices()[0].device_kind.lower()
    except Exception:
        return True
    return any(t in kind for t in ("v5e", "v5 lite", "v5lite", "v6"))


def _rc_kernel(xcol_ref, w_ref, b_ref, o_ref, *, activated):
    # xcol_ref: (1, K, L)   bf16 im2col block (K = 9*Cin, L lane-dense, L % 128 == 0)
    # w_ref   : (Cout, K)   bf16 folded weights
    # b_ref   : (Cout, 1)   f32 bias
    # o_ref   : (1, Cout, L) output block
    acc = jnp.dot(w_ref[...], xcol_ref[0], preferred_element_type=jnp.float32)
    acc = acc + b_ref[...]            # (Cout, 1) broadcast along lanes, f32 epilogue
    if activated:
        acc = jnp.maximum(acc, 0.0)
    o_ref[0] = acc.astype(o_ref.dtype)   # lane-dense store


def rc_forward(x_nchw, weight_oihw, bias, *, pad_size=1, activated=True,
               compute_dtype=jnp.bfloat16, out_dtype=jnp.float32,
               fold_batch=None):
    """RC forward. x: (N,Cin,H,W), weight: (Cout,Cin,3,3), bias: (Cout,).
    Returns (N, Cout, H, W) in `out_dtype`."""
    N, Cin, H, W = x_nchw.shape
    Cout, Cin_w, kH, kW = weight_oihw.shape
    assert kH == 3 and kW == 3 and pad_size == 1 and Cin_w == Cin, "RC defaults: k=3, pad=1"

    if fold_batch is None:
        fold_batch = _default_fold_batch()

    Hp, Wp = H + 2 * pad_size, W + 2 * pad_size
    out_lanes = H * Wp                       # valid flat length per (n, cout), row-major (H, Wp)
    L = _round_up(out_lanes, 128)            # lane-dense padded length (288 -> 384)
    K = 9 * Cin
    max_shift = 2 * Wp + 2                   # largest tap offset (dy=2, dx=2)
    lp = max(Hp * Wp, max_shift + L)         # flat input length the tap slices need

    # ---- wrapper glue: reflection pad + flatten + im2col (few tens of KB) ----
    xp = jnp.pad(
        x_nchw,
        ((0, 0), (0, 0), (pad_size, pad_size), (pad_size, pad_size)),
        mode="reflect",
    )                                                     # (N, Cin, Hp, Wp)
    xp_flat = xp.reshape(N, Cin, Hp * Wp)
    xp_flat = jnp.pad(xp_flat, ((0, 0), (0, 0), (0, lp - Hp * Wp)))
    xp_flat = xp_flat.astype(compute_dtype)               # (N, Cin, lp) bf16

    # Tap t = dy*3 + dx -> lane shift dy*Wp + dx in the flattened padded image.
    shifts = tuple(dy * Wp + dx for dy in range(3) for dx in range(3))

    # Weights folded to (Cout, K) with K ordered (cin, dy, dx) — matches im2col below.
    w2d = weight_oihw.reshape(Cout, K).astype(compute_dtype)
    bias2d = bias.reshape(Cout, 1).astype(jnp.float32)

    if fold_batch:
        # Single grid step; batch concatenated along lanes: xcol[(cin,tap), (n,l)].
        xp_t = jnp.transpose(xp_flat, (1, 0, 2))                              # (Cin, N, lp)
        xcol = jnp.stack([xp_t[:, :, s:s + L] for s in shifts], axis=1)       # (Cin, 9, N, L)
        xcol = xcol.reshape(1, K, N * L)
        lanes = N * L
        grid = (1,)
        semantics = ("arbitrary",)
        blk_idx = lambda i: (0, 0, 0)
        out_shape = jax.ShapeDtypeStruct((1, Cout, N * L), out_dtype)
    else:
        # grid=(N,) "parallel": one batch element per TensorCore on v7x.
        xcol = jnp.stack([xp_flat[:, :, s:s + L] for s in shifts], axis=2)    # (N, Cin, 9, L)
        xcol = xcol.reshape(N, K, L)
        lanes = L
        grid = (N,)
        semantics = ("parallel",)
        blk_idx = lambda n: (n, 0, 0)
        out_shape = jax.ShapeDtypeStruct((N, Cout, L), out_dtype)

    kernel = functools.partial(_rc_kernel, activated=activated)

    # VMEM limit from the actual block footprint (double-buffered) + headroom.
    block_bytes = (K * lanes * jnp.dtype(compute_dtype).itemsize
                   + Cout * lanes * jnp.dtype(out_dtype).itemsize
                   + Cout * K * jnp.dtype(compute_dtype).itemsize
                   + Cout * 4)
    vmem_limit = max(8 << 20, 4 * block_bytes + (2 << 20))

    out_flat = pl.pallas_call(
        kernel,
        out_shape=out_shape,
        grid_spec=pltpu.PrefetchScalarGridSpec(
            num_scalar_prefetch=0,
            grid=grid,
            in_specs=[
                pl.BlockSpec((1, K, lanes), blk_idx),
                pl.BlockSpec((Cout, K), lambda i: (0, 0)),
                pl.BlockSpec((Cout, 1), lambda i: (0, 0)),
            ],
            out_specs=pl.BlockSpec((1, Cout, lanes), blk_idx),
        ),
        compiler_params=pltpu.CompilerParams(
            dimension_semantics=semantics,
            vmem_limit_bytes=vmem_limit,
        ),
    )(xcol, w2d, bias2d)

    # Restore the exact module output layout: drop padded lanes / padded columns.
    if fold_batch:
        out = out_flat.reshape(Cout, N, L)[:, :, :out_lanes]
        out = out.reshape(Cout, N, H, Wp).transpose(1, 0, 2, 3)[:, :, :, :W]
    else:
        out = out_flat[:, :, :out_lanes].reshape(N, Cout, H, Wp)[:, :, :, :W]
    return out


def _reference(x_nchw, weight_oihw, bias, *, pad_size=1, activated=True,
               compute_dtype=jnp.float32):
    """Plain-JAX reference (lax conv, NCHW/OIHW) with matching input quantization."""
    xq = x_nchw.astype(compute_dtype).astype(jnp.float32)
    wq = weight_oihw.astype(compute_dtype).astype(jnp.float32)
    xp = jnp.pad(
        xq,
        ((0, 0), (0, 0), (pad_size, pad_size), (pad_size, pad_size)),
        mode="reflect",
    )
    out = jax.lax.conv_general_dilated(
        xp, wq, window_strides=(1, 1), padding="VALID",
        dimension_numbers=("NCHW", "OIHW", "NCHW"),
        precision=jax.lax.Precision.HIGHEST,
    )
    out = out + bias.reshape(1, -1, 1, 1)
    if activated:
        out = jnp.maximum(out, 0.0)
    return out


if __name__ == "__main__":
    # Small shapes consistent with the module: batch=2, Cin=4, Cout=8, 16x16 spatial.
    N, Cin, Cout, H, W = 2, 4, 8, 16, 16

    key = jax.random.PRNGKey(0)
    kx, kw, kb = jax.random.split(key, 3)

    x = jax.random.normal(kx, (N, Cin, H, W), dtype=jnp.float32)
    bound = 1.0 / (Cin * 3 * 3) ** 0.5
    weight = jax.random.uniform(
        kw, (Cout, Cin, 3, 3), dtype=jnp.float32, minval=-bound, maxval=bound
    )
    bias = jax.random.uniform(
        kb, (Cout,), dtype=jnp.float32, minval=-bound, maxval=bound
    )

    ref_relu = _reference(x, weight, bias, activated=True, compute_dtype=jnp.bfloat16)
    ref_lin = _reference(x, weight, bias, activated=False, compute_dtype=jnp.bfloat16)

    # Auto per-generation batch handling, ReLU path.
    out = jax.block_until_ready(rc_forward(x, weight, bias, activated=True))
    assert out.shape == (N, Cout, H, W)
    assert jnp.allclose(out, ref_relu, atol=2e-3, rtol=2e-3), "mismatch vs reference (relu)"

    # Non-activated path of the module.
    out_lin = jax.block_until_ready(rc_forward(x, weight, bias, activated=False))
    assert jnp.allclose(out_lin, ref_lin, atol=2e-3, rtol=2e-3), "mismatch vs reference (linear)"

    # Exercise both batch-handling code paths (lane-folded single step and
    # grid=(N,) parallel) regardless of which chip we are on.
    for fb in (True, False):
        o = jax.block_until_ready(
            rc_forward(x, weight, bias, activated=True, fold_batch=fb)
        )
        assert jnp.allclose(o, ref_relu, atol=2e-3, rtol=2e-3), f"mismatch (fold_batch={fb})"

    print("KERNEL_OK")
</pallas_src>

<mosaic_0001>
module attributes {stable_mosaic.version = 11 : i64} {
  func.func @_rc_kernel(%arg0: i32, %arg1: memref<1x36x384xbf16, #tpu.memory_space<vmem>>, %arg2: memref<8x36xbf16, #tpu.memory_space<vmem>>, %arg3: memref<8x1xf32, #tpu.memory_space<vmem>>, %arg4: memref<1x8x384xf32, #tpu.memory_space<vmem>>) attributes {dimension_semantics = [#tpu.dimension_semantics<parallel>], iteration_bounds = array<i64: 2>, scalar_prefetch = 0 : i64, scratch_operands = 0 : i64, tpu.core_type = #tpu.core_type<tc>, window_params = [{transform_indices = @transform_0, window_bounds = array<i64: 1, 36, 384>}, {pipeline_mode = #tpu.pipeline_mode<synchronous>, transform_indices = @transform_1, window_bounds = array<i64: 8, 36>}, {pipeline_mode = #tpu.pipeline_mode<synchronous>, transform_indices = @transform_2, window_bounds = array<i64: 8, 1>}, {transform_indices = @transform_3, window_bounds = array<i64: 1, 8, 384>}]} {
    %c0 = arith.constant 0 : index
    %c0_0 = arith.constant 0 : index
    %0 = vector.load %arg2[%c0, %c0_0] : memref<8x36xbf16, #tpu.memory_space<vmem>>, vector<8x36xbf16>
    %c0_1 = arith.constant 0 : index
    %c0_2 = arith.constant 0 : index
    %c0_3 = arith.constant 0 : index
    %1 = vector.load %arg1[%c0_1, %c0_2, %c0_3] : memref<1x36x384xbf16, #tpu.memory_space<vmem>>, vector<1x36x384xbf16>
    %2 = vector.shape_cast %1 : vector<1x36x384xbf16> to vector<36x384xbf16>
    %cst = arith.constant dense<0.000000e+00> : vector<8x384xf32>
    %3 = tpu.matmul %0, %2, %cst {dimension_numbers = #tpu.dot_dimension_numbers<[1], [0], [0], [1], [0, 0, 1, 1], [], []>} : vector<8x36xbf16>, vector<36x384xbf16>, vector<8x384xf32> -> vector<8x384xf32>
    %c0_4 = arith.constant 0 : index
    %c0_5 = arith.constant 0 : index
    %4 = vector.load %arg3[%c0_4, %c0_5] : memref<8x1xf32, #tpu.memory_space<vmem>>, vector<8x1xf32>
    %5 = vector.broadcast %4 : vector<8x1xf32> to vector<8x384xf32>
    %6 = arith.addf %3, %5 : vector<8x384xf32>
    %cst_6 = arith.constant 0.000000e+00 : f32
    %7 = vector.broadcast %cst_6 : f32 to vector<8x384xf32>
    %8 = arith.maximumf %6, %7 : vector<8x384xf32>
    %c0_7 = arith.constant 0 : index
    %c0_8 = arith.constant 0 : index
    %c0_9 = arith.constant 0 : index
    %9 = vector.load %arg4[%c0_7, %c0_8, %c0_9] : memref<1x8x384xf32, #tpu.memory_space<vmem>>, vector<1x8x384xf32>
    %10 = vector.shape_cast %9 : vector<1x8x384xf32> to vector<8x384xf32>
    %11 = vector.shape_cast %8 : vector<8x384xf32> to vector<1x8x384xf32>
    tpu.vector_store %arg4[%c0_7, %c0_8, %c0_9], %11 {strides = array<i32>} : memref<1x8x384xf32, #tpu.memory_space<vmem>>, vector<1x8x384xf32>,
    return
  }
  func.func @transform_0(%arg0: i32) -> (i32, i32, i32) {
    %c0_i32 = arith.constant 0 : i32
    %c0_i32_0 = arith.constant 0 : i32
    %c0_i32_1 = arith.constant 0 : i32
    return %arg0, %c0_i32, %c0_i32_0 : i32, i32, i32
  }
  func.func @transform_1(%arg0: i32) -> (i32, i32) {
    %c0_i32 = arith.constant 0 : i32
    %c0_i32_0 = arith.constant 0 : i32
    %c0_i32_1 = arith.constant 0 : i32
    return %c0_i32, %c0_i32_0 : i32, i32
  }
  func.func @transform_2(%arg0: i32) -> (i32, i32) {
    %c0_i32 = arith.constant 0 : i32
    %c0_i32_0 = arith.constant 0 : i32
    %c0_i32_1 = arith.constant 0 : i32
    return %c0_i32, %c0_i32_0 : i32, i32
  }
  func.func @transform_3(%arg0: i32) -> (i32, i32, i32) {
    %c0_i32 = arith.constant 0 : i32
    %c0_i32_0 = arith.constant 0 : i32
    %c0_i32_1 = arith.constant 0 : i32
    return %arg0, %c0_i32, %c0_i32_0 : i32, i32, i32
  }
}

</mosaic_0001>

<llo_original>
// kernel: tpu_custom_call.1
$region0: #{tpu_custom_call.1}
  #allocation0 [shape = 'u32[]', space=smem, size = 0x4, offset = 0x4, fixed_abs, tag = 'smem constant byte address 0x4 - core index']
  #allocation1 [shape = 'u32[144,128]{1,0:T(1,128)}', space=vmem, size = 0x12000, scoped, tag = 'internal scratch']
  %s0 = inlined_call_operand.vmem [shape: bf16[2,36,384], index: 0, kind: input, shape index: {}]
  %s1 = inlined_call_operand.vmem [shape: bf16[8,36], index: 1, kind: input, shape index: {}]
  %s2 = inlined_call_operand.vmem [shape: f32[8,1], index: 2, kind: input, shape index: {}]
  %s3 = inlined_call_operand.hbm [shape: f32[2,8,384], index: 3, kind: output, shape index: {}]
  %s4 = sld [smem:[#allocation0]]
  $region45: #{tpu_custom_call.1} parent=0
    _
  %s6 = ssub.s32 1, %s4
  %s7 = scalar_select 0, %s6, %s4
  $region1: #{tpu_custom_call.1} parent=0
    #allocation2 [shape = 'u8[24576]{0}', space=vmem, size = 0x6000, scoped, tag = 'output window, operand 0']
    #allocation3 [shape = 's32[2]{0}', space=sflag, size = 0x8, scoped, tag = 'scoped memory for tpu_custom_call.1']
    %8 = vsyncpa [#allocation3], 0
    %s9 = scalar_lea.sflag [#allocation3], 1
    %10 = vsyncpa %s9, 0
    loop: start=0, step=1, limit=4
    $region2: #{tpu_custom_call.1} parent=1 // loop_pre_header
      _
    $region3: #{tpu_custom_call.1} parent=1 // loop_header
      %s12 = sphi 0, %s16
      %p13 = scmp.ge.s32.totalorder %s12, 4
      %s22 = sphi 0, %s24
      %s25 = sphi 0, %s22
      %s26 = sphi 0, %s25
      %s42 = sphi 0, %s26
      %s46 = sphi 0, %s46
      %s48 = sphi 0, %s46
      %s49 = sphi 0, %s48
      %s63 = sphi 0, %s49
      %s67 = sphi 0, %s67
      %s69 = sphi 0, %s67
      %s70 = sphi 0, %s69
      %s84 = sphi 0, %s70
      %s90 = sphi 0, %s92
      %s93 = sphi 0, %s90
      %s94 = sphi 0, %s93
      %s110 = sphi 0, %s94
    $region4: #{tpu_custom_call.1} parent=1 // loop_header_branch
      %15 = sbr.rel (%p13) target = $region8
    $region5: #{tpu_custom_call.1} parent=1 // loop_body
      %s17 = ssub.s32 %s12, 1
      %s18 = ssub.s32 %s12, 2
      %s19 = sadd.s32 %s12, 1
      %s20 = ssub.s32 %s12, %s19
      %p21 = scmp.eq.s32.totalorder %s20, 0
      %s23 = sadd.s32 %s22, 1
      %s24 = scalar_select %p21, %s22, %s23
      %p27 = pneg %p21
      %p28 = scmp.eq.s32.totalorder %s12, 1
      %p29 = por %p27, %p28
      %p30 = scmp.ne.s32.totalorder %s22, %s25
      %p31 = scmp.eq.s32.totalorder %s12, 0
      %p32 = por %p30, %p31
      %p33 = scmp.ne.s32.totalorder %s22, %s25
      %p34 = scmp.eq.s32.totalorder %s17, 1
      %p35 = por %p33, %p34
      %p36 = scmp.ne.s32.totalorder %s25, %s26
      %p37 = scmp.eq.s32.totalorder %s17, 0
      %p38 = por %p36, %p37
      %p39 = scmp.ne.s32.totalorder %s25, %s26
      %p40 = scmp.eq.s32.totalorder %s18, 1
      %p41 = por %p39, %p40
      %p43 = scmp.ne.s32.totalorder %s26, %s42
      %p44 = scmp.eq.s32.totalorder %s18, 0
      %p45 = por %p43, %p44
      %s47 = sadd.s32 %s46, 1
      %p50 = scmp.eq.s32.totalorder %s12, 1
      %p51 = scmp.ne.s32.totalorder %s46, %s48
      %p52 = scmp.eq.s32.totalorder %s12, 0
      %p53 = por %p51, %p52
      %p54 = scmp.ne.s32.totalorder %s46, %s48
      %p55 = scmp.eq.s32.totalorder %s17, 1
      %p56 = por %p54, %p55
      %p57 = scmp.ne.s32.totalorder %s48, %s49
      %p58 = scmp.eq.s32.totalorder %s17, 0
      %p59 = por %p57, %p58
      %p60 = scmp.ne.s32.totalorder %s48, %s49
      %p61 = scmp.eq.s32.totalorder %s18, 1
      %p62 = por %p60, %p61
      %p64 = scmp.ne.s32.totalorder %s49, %s63
      %p65 = scmp.eq.s32.totalorder %s18, 0
      %p66 = por %p64, %p65
      %s68 = sadd.s32 %s67, 1
      %p71 = scmp.eq.s32.totalorder %s12, 1
      %p72 = scmp.ne.s32.totalorder %s67, %s69
      %p73 = scmp.eq.s32.totalorder %s12, 0
      %p74 = por %p72, %p73
      %p75 = scmp.ne.s32.totalorder %s67, %s69
      %p76 = scmp.eq.s32.totalorder %s17, 1
      %p77 = por %p75, %p76
      %p78 = scmp.ne.s32.totalorder %s69, %s70
      %p79 = scmp.eq.s32.totalorder %s17, 0
      %p80 = por %p78, %p79
      %p81 = scmp.ne.s32.totalorder %s69, %s70
      %p82 = scmp.eq.s32.totalorder %s18, 1
      %p83 = por %p81, %p82
      %p85 = scmp.ne.s32.totalorder %s70, %s84
      %p86 = scmp.eq.s32.totalorder %s18, 0
      %p87 = por %p85, %p86
      %s88 = ssub.s32 %s12, %s19
      %p89 = scmp.eq.s32.totalorder %s88, 0
      %s91 = sadd.s32 %s90, 1
      %s92 = scalar_select %p89, %s90, %s91
      %p95 = pneg %p89
      %p96 = scmp.eq.s32.totalorder %s12, 1
      %p97 = por %p95, %p96
      %p98 = scmp.ne.s32.totalorder %s90, %s93
      %p99 = scmp.eq.s32.totalorder %s12, 0
      %p100 = por %p98, %p99
      %p101 = scmp.ne.s32.totalorder %s90, %s93
      %p102 = scmp.eq.s32.totalorder %s17, 1
      %p103 = por %p101, %p102
      %p104 = scmp.ne.s32.totalorder %s93, %s94
      %p105 = scmp.eq.s32.totalorder %s17, 0
      %p106 = por %p104, %p105
      %p107 = scmp.ne.s32.totalorder %s93, %s94
      %p108 = scmp.eq.s32.totalorder %s18, 1
      %p109 = por %p107, %p108
      %p111 = scmp.ne.s32.totalorder %s94, %s110
      %p112 = scmp.eq.s32.totalorder %s18, 0
      %p113 = por %p111, %p112
      %p114 = scmp.le.s32.totalorder 1, %s12
      %p115 = scmp.lt.s32.totalorder %s12, 3
      %p116 = pnand %p114, %p115
      %p117 = pneg %p116
      // Predicated region
      $region9: #{tpu_custom_call.1} parent=5 // pred_check
        _
      $region10: #{tpu_custom_call.1} parent=5 // pred_check_branch
        %119 = sbr.rel (%p116) target = $region12
      $region11: #{tpu_custom_call.1} parent=5 // pred_region
        %s120 = ssub.s32 %s12, 1
        // Predicated region
        $region13: #{tpu_custom_call.1} parent=11 // pred_check
          %p121 = pneg %p59
        $region14: #{tpu_custom_call.1} parent=11 // pred_check_branch
          %123 = sbr.rel (%p121) target = $region16
        $region15: #{tpu_custom_call.1} parent=11 // pred_region
          _
        $region16: #{tpu_custom_call.1} parent=11 // pred_fallthru
          _
        // Predicated region
        $region17: #{tpu_custom_call.1} parent=11 // pred_check
          %p124 = pneg %p80
        $region18: #{tpu_custom_call.1} parent=11 // pred_check_branch
          %126 = sbr.rel (%p124) target = $region20
        $region19: #{tpu_custom_call.1} parent=11 // pred_region
          _
        $region20: #{tpu_custom_call.1} parent=11 // pred_fallthru
          _
      $region12: #{tpu_custom_call.1} parent=5 // pred_fallthru
        _
      %p127 = scmp.lt.s32.totalorder %s12, 2
      // Predicated region
      $region21: #{tpu_custom_call.1} parent=5 // pred_check
        %p128 = pneg %p127
      $region22: #{tpu_custom_call.1} parent=5 // pred_check_branch
        %130 = sbr.rel (%p128) target = $region24
      $region23: #{tpu_custom_call.1} parent=5 // pred_region
        // Predicated region
        $region25: #{tpu_custom_call.1} parent=23 // pred_check
          %p131 = pneg %p32
        $region26: #{tpu_custom_call.1} parent=23 // pred_check_branch
          %133 = sbr.rel (%p131) target = $region28
        $region27: #{tpu_custom_call.1} parent=23 // pred_region
          %p134 = scmp.lt.s32.totalorder %s12, 1
          %s135 = scalar_select %p134, %s12, 1
          %s136 = smul.addr %s135, 15
          %s137 = smul.addr %s136, 4
          %s138 = scalar_lea.vmem %s0, %s137
        $region28: #{tpu_custom_call.1} parent=23 // pred_fallthru
          _
      $region24: #{tpu_custom_call.1} parent=5 // pred_fallthru
        _
      %p139 = scmp.le.s32.totalorder 1, %s12
      %p140 = scmp.lt.s32.totalorder %s12, 3
      %p141 = pnand %p139, %p140
      %p142 = pneg %p141
      // Predicated region
      $region29: #{tpu_custom_call.1} parent=5 // pred_check
        _
      $region30: #{tpu_custom_call.1} parent=5 // pred_check_branch
        %144 = sbr.rel (%p141) target = $region32
      $region31: #{tpu_custom_call.1} parent=5 // pred_region
        %s145 = ssub.s32 %s12, 1
        %p146 = scmp.lt.s32.totalorder %s17, 1
        %s147 = scalar_select %p146, %s17, 1
        %s148 = smul.addr %s147, 15
        %s149 = smul.addr %s148, 4
        %s150 = scalar_lea.vmem %s0, %s149
        %p151 = pneg %p38
        %p152 = pneg %p35
        %p153 = pneg %p59
        %p154 = pneg %p56
        %p155 = pneg %p80
        %p156 = pneg %p77
        %p157 = pneg %p106
        %p158 = pneg %p103
        %s159 = sand.u32 %s93, 1
        %s160 = scalar_lea.sflag [#allocation3], %s159
        %s161 = sand.u32 %s93, 1
        %s162 = smul.addr %s161, 24
        %s163 = scalar_lea.vmem [#allocation2], %s162
        %p164 = scmp.lt.s32.totalorder %s17, 1
        %s165 = scalar_select %p164, %s17, 1
        %s166 = smul.addr %s165, 15
        %s167 = smul.addr %s166, 4
        %s168 = scalar_lea.vmem %s0, %s167
        %v170 = vld [vmem:[%s1] sm:$0xf]
        %v171 = vld [vmem:[%s168] sm:$0xff]
        %v172 = vld [vmem:[%s168 + $0x8] sm:$0xf]
        %v173 = vld [vmem:[%s168 + $0xc] sm:$0xff]
        %v174 = vld [vmem:[%s168 + $0x14] sm:$0xf]
        %v175 = vld [vmem:[%s168 + $0x18] sm:$0xff]
        %v176 = vld [vmem:[%s168 + $0x20] sm:$0xf]
        %v177 = vld [vmem:[%s168 + $0x24] sm:$0xff]
        %v178 = vld [vmem:[%s168 + $0x2c] sm:$0xf]
        %v179 = vld [vmem:[%s168 + $0x30] sm:$0x33]
        %v180 = vld [vmem:[%s168 + $0x38] sm:$0x3]
        %v181 = vld [vmem:[%s2] sm:$0xff]
        %183 = vset.pattern.permute.xlu0 0
        %184 = vperm.xlu0 %183, %v181
        %v185 = vpop.permute.xlu0 %184
        %v197 = vunpack.c.l.b16 %v171
        %v198 = vunpack.c.h.b16 %v171
        %v199 = vunpack.c.l.b16 %v172
        %v200 = vunpack.c.l.b16 %v173
        %v201 = vunpack.c.h.b16 %v173
        %v202 = vunpack.c.l.b16 %v174
        %v203 = vunpack.c.l.b16 %v175
        %v204 = vunpack.c.h.b16 %v175
        %v205 = vunpack.c.l.b16 %v176
        %v206 = vunpack.c.l.b16 %v177
        %v207 = vunpack.c.h.b16 %v177
        %v208 = vunpack.c.l.b16 %v178
        %v209 = vunpack.c.l.b16 %v179
        %v210 = vunpack.c.h.b16 %v179
        %v211 = vunpack.c.l.b16 %v180
        %v212 = vpack.c.b16 %v200, %v197
        %v213 = vpack.c.b16 %v201, %v198
        %v214 = vpack.c.b16 %v202, %v199
        %v215 = vpack.c.b16 %v206, %v203
        %v216 = vpack.c.b16 %v207, %v204
        %v217 = vpack.c.b16 %v208, %v205
        %v218 = vpack.c.b16 %v209, %v209
        %v219 = vpack.c.b16 %v210, %v210
        %v220 = vpack.c.b16 %v211, %v211
        %vm227 = vcmask 293888
        %v229 = vsel %vm227, %v170, 0
        %vm231 = vcmask 1041408
        %v233 = vsel %vm231, %v218, 0
        %v236 = vsel %vm231, %v219, 0
        %v239 = vsel %vm231, %v220, 0
        %241 = vmatprep.subr.bf16.mxu0 %v213
        %242 = vmatpush1.bf16.msra.mxu0 %v212
        %243 = vmatprep.subr.bf16.mxu0 %v216
        %244 = vmatpush1.bf16.msra.mxu0 %v215
        %245 = vmatprep.subr.bf16.mxu0 %v236
        %246 = vmatpush1.bf16.msra.mxu0 %v233
        %247 = vmatprep.subr.bf16.mxu0 0
        %248 = vmatpush1.bf16.msra.mxu0 0
        %249 = vmatprep.subr.bf16.mxu0 0
        %250 = vmatpush1.bf16.msra.mxu0 0
        %251 = vmatprep.subr.bf16.mxu0 0
        %252 = vmatpush1.bf16.msra.mxu0 0
        %253 = vmatprep.subr.bf16.mxu0 0
        %254 = vmatpush1.bf16.msra.mxu0 0
        %255 = vmatprep.subr.bf16.mxu0 0
        %256 = vmatpush1.bf16.msra.mxu0 0
        %257 = vmatprep.subr.bf16.mxu0 0
        %258 = vmatpush1.bf16.msra.mxu0 0
        %259 = vmatprep.subr.bf16.mxu0 0
        %260 = vmatpush1.bf16.msra.mxu0 0
        %261 = vmatprep.subr.bf16.mxu0 0
        %262 = vmatpush1.bf16.msra.mxu0 0
        %263 = vmatprep.subr.bf16.mxu0 0
        %264 = vmatpush1.bf16.msra.mxu0 0
        %265 = vmatprep.subr.bf16.mxu0 0
        %266 = vmatpush1.bf16.msra.mxu0 0
        %267 = vmatprep.subr.bf16.mxu0 0
        %268 = vmatpush1.bf16.msra.mxu0 0
        %269 = vmatprep.subr.bf16.mxu0 0
        %270 = vmatpush1.bf16.msra.mxu0 0
        %271 = vmatprep.subr.bf16.mxu0 0
        %272 = vmatpush1.bf16.msra.mxu0 0
        %273 = vmatprep.mubr.bf16.mxu0 0
        %274 = vmatmul.mubr.bf16.gmra.mrb[0].mxu0 %v229
        %v275 = vpop.f32.mrb[0].mxu0
        %v276 = vadd.f32 %v185, %v275
        %v277 = vpop.f32.mrb[0].mxu0
        %v278 = vadd.f32 %v185, %v277
        %v279 = vpop.f32.mrb[0].mxu0
        %v280 = vpop.f32.mrb[0].mxu0
        %281 = vdwg.mxu0
        %282 = vmatprep.subr.bf16.mxu0 0
        %283 = vmatpush1.bf16.msra.mxu0 %v214
        %284 = vmatprep.subr.bf16.mxu0 0
        %285 = vmatpush1.bf16.msra.mxu0 %v217
        %286 = vmatprep.subr.bf16.mxu0 0
        %287 = vmatpush1.bf16.msra.mxu0 %v239
        %288 = vmatprep.subr.bf16.mxu0 0
        %289 = vmatpush1.bf16.msra.mxu0 0
        %290 = vmatprep.subr.bf16.mxu0 0
        %291 = vmatpush1.bf16.msra.mxu0 0
        %292 = vmatprep.subr.bf16.mxu0 0
        %293 = vmatpush1.bf16.msra.mxu0 0
        %294 = vmatprep.subr.bf16.mxu0 0
        %295 = vmatpush1.bf16.msra.mxu0 0
        %296 = vmatprep.subr.bf16.mxu0 0
        %297 = vmatpush1.bf16.msra.mxu0 0
        %298 = vmatprep.subr.bf16.mxu0 0
        %299 = vmatpush1.bf16.msra.mxu0 0
        %300 = vmatprep.subr.bf16.mxu0 0
        %301 = vmatpush1.bf16.msra.mxu0 0
        %302 = vmatprep.subr.bf16.mxu0 0
        %303 = vmatpush1.bf16.msra.mxu0 0
        %304 = vmatprep.subr.bf16.mxu0 0
        %305 = vmatpush1.bf16.msra.mxu0 0
        %306 = vmatprep.subr.bf16.mxu0 0
        %307 = vmatpush1.bf16.msra.mxu0 0
        %308 = vmatprep.subr.bf16.mxu0 0
        %309 = vmatpush1.bf16.msra.mxu0 0
        %310 = vmatprep.subr.bf16.mxu0 0
        %311 = vmatpush1.bf16.msra.mxu0 0
        %312 = vmatprep.subr.bf16.mxu0 0
        %313 = vmatpush1.bf16.msra.mxu0 0
        %314 = vmatprep.mubr.bf16.mxu0 0
        %315 = vmatmul.mubr.bf16.gmra.mrb[0].mxu0 %v229
        %v316 = vpop.f32.mrb[0].mxu0
        %v317 = vadd.f32 %v185, %v316
        %v318 = vpop.f32.mrb[0].mxu0
        %v319 = vpop.f32.mrb[0].mxu0
        %v320 = vpop.f32.mrb[0].mxu0
        %321 = vdwg.mxu0
        %v322 = vmax.f32 %v276, 0.0
        %v323 = vmax.f32 %v278, 0.0
        %v324 = vmax.f32 %v317, 0.0
        %325 = vst [vmem:[%s163] sm:$0xff] %v322
        %326 = vst [vmem:[%s163 + $0x8] sm:$0xff] %v323
        %327 = vst [vmem:[%s163 + $0x10] sm:$0xff] %v324
        %s328 = sand.u32 %s93, 1
        %s329 = scalar_lea.sflag [#allocation3], %s328
        %s330 = sand.u32 %s93, 1
        %s331 = smul.addr %s330, 24
        %s332 = scalar_lea.vmem [#allocation2], %s331
        // Predicated region
        $region33: #{tpu_custom_call.1} parent=31 // pred_check
          %p333 = pneg %p103
        $region34: #{tpu_custom_call.1} parent=31 // pred_check_branch
          %335 = sbr.rel (%p333) target = $region36
        $region35: #{tpu_custom_call.1} parent=31 // pred_region
          %s337 = ssub.s32 384, 384
          %338 = vsyncadd %s329, %s337
          %s339 = smul.addr %s17, 3
          %s340 = smul.addr %s339, 128
          %s341 = scalar_lea.hbm %s3, %s340
          %s343 = sshll.u32 %s332, 4
          %s344 = int_to_ptr.vmem [resolvable:$true] %s343
          %346 = dma.vmem_to_hbm [thread:$0]  %s344, 384, %s341, %s329
        $region36: #{tpu_custom_call.1} parent=31 // pred_fallthru
          _
      $region32: #{tpu_custom_call.1} parent=5 // pred_fallthru
        _
      %p347 = scmp.le.s32.totalorder 2, %s12
      // Predicated region
      $region37: #{tpu_custom_call.1} parent=5 // pred_check
        %p348 = pneg %p347
      $region38: #{tpu_custom_call.1} parent=5 // pred_check_branch
        %350 = sbr.rel (%p348) target = $region40
      $region39: #{tpu_custom_call.1} parent=5 // pred_region
        %s351 = ssub.s32 %s12, 2
        // Predicated region
        $region41: #{tpu_custom_call.1} parent=39 // pred_check
          %p352 = pneg %p109
        $region42: #{tpu_custom_call.1} parent=39 // pred_check_branch
          %354 = sbr.rel (%p352) target = $region44
        $region43: #{tpu_custom_call.1} parent=39 // pred_region
          %s355 = sand.u32 %s94, 1
          %s356 = scalar_lea.sflag [#allocation3], %s355
          %s357 = sand.u32 %s94, 1
          %s358 = smul.addr %s357, 24
          %s359 = scalar_lea.vmem [#allocation2], %s358
          %360 = dma.done %s356, 384
        $region44: #{tpu_custom_call.1} parent=39 // pred_fallthru
          _
      $region40: #{tpu_custom_call.1} parent=5 // pred_fallthru
        _
    $region6: #{tpu_custom_call.1} parent=1 // loop_footer
      %s16 = sadd.s32 1, %s12
    $region7: #{tpu_custom_call.1} parent=1 // loop_footer_branch
      %11 = sbr.rel target = $region3
    $region8: #{tpu_custom_call.1} parent=1 // loop_exit
      _
    %361 = vsyncpa [#allocation3], 1
    %s362 = scalar_lea.sflag [#allocation3], 1
    %363 = vsyncpa %s362, 1

</llo_original>
